<compile_context>
chip_gen: v7x
topology: tpu7x:2x2x1
jax: 0.10.0
libtpu: 0.0.40
codegen_flags: <defaults>
</compile_context>

<pallas_src>
import functools

import jax
import jax.numpy as jnp
from jax.experimental import pallas as pl
from jax.experimental.pallas import tpu as pltpu

LANE = 128      # TPU lane width (last-dim tile)
SUB = 8         # sublane count of one f32 vreg
TM_MAX = 4096   # max rows per grid step (~2 MiB f32 per input block)


def _make_sq_diff_kernel(tm):
    """Kernel: accumulate sum((x - x0)^2) over a 1-D grid of (tm, 128) tiles."""

    def kernel(x_ref, x0_ref, o_ref, acc_ref):
        i = pl.program_id(0)

        @pl.when(i == 0)
        def _():
            acc_ref[...] = jnp.zeros_like(acc_ref)

        d = x_ref[...].astype(jnp.float32) - x0_ref[...].astype(jnp.float32)
        sq = d * d
        # Fold (tm, 128) -> (8, 128) with elementwise VPU adds; no per-step
        # cross-lane (XLU) reduction and no per-step (1, 1) store.
        acc_ref[...] += jnp.sum(sq.reshape(tm // SUB, SUB, LANE), axis=0)

        @pl.when(i == pl.num_programs(0) - 1)
        def _():
            # Single cross-lane reduce + scalar store in the epilogue.
            o_ref[...] = jnp.sum(acc_ref[...], keepdims=True)

    return kernel


@functools.partial(jax.jit, static_argnames=("inv_denom",))
def _upper_level_impl(x, x0, inv_denom):
    n = x.size
    rows = n // LANE
    rows_k = (rows // SUB) * SUB           # sublane-aligned rows for the kernel

    x_flat = x.reshape(-1)
    x0_flat = x0.reshape(-1)

    total = jnp.zeros((), jnp.float32)
    main = 0

    if rows_k > 0:
        tm = min(TM_MAX, rows_k)
        grid_rows = rows_k // tm
        rows_main = grid_rows * tm
        main = rows_main * LANE

        if main == n:
            # Pure metadata reshape — no HBM copy.
            x_main = x.reshape(rows_main, LANE)
            x0_main = x0.reshape(rows_main, LANE)
        else:
            x_main = x_flat[:main].reshape(rows_main, LANE)
            x0_main = x0_flat[:main].reshape(rows_main, LANE)

        bytes_accessed = main * (x.dtype.itemsize + x0.dtype.itemsize) + 4

        out = pl.pallas_call(
            _make_sq_diff_kernel(tm),
            out_shape=jax.ShapeDtypeStruct((1, 1), jnp.float32),
            grid_spec=pltpu.PrefetchScalarGridSpec(
                num_scalar_prefetch=0,
                grid=(grid_rows,),
                in_specs=[
                    pl.BlockSpec((tm, LANE), lambda i: (i, 0)),
                    pl.BlockSpec((tm, LANE), lambda i: (i, 0)),
                ],
                out_specs=pl.BlockSpec((1, 1), lambda i: (0, 0)),
                scratch_shapes=[pltpu.VMEM((SUB, LANE), jnp.float32)],
            ),
            compiler_params=pltpu.CompilerParams(
                dimension_semantics=("arbitrary",)),   # reduction axis
            cost_estimate=pl.CostEstimate(
                flops=3 * main, transcendentals=0,
                bytes_accessed=bytes_accessed),
        )(x_main, x0_main)
        total = total + out[0, 0]

    if main < n:
        # Ragged tail (smaller than one kernel block): tiny pure-JAX reduction.
        dt = (x_flat[main:].astype(jnp.float32)
              - x0_flat[main:].astype(jnp.float32))
        total = total + jnp.sum(dt * dt)

    # Static denominator folded in as a reciprocal multiply.
    return total * inv_denom


class UpperLevel:
    """JAX/Pallas port of the PyTorch Upper_Level module."""

    def __init__(self, x0):
        self.x0 = x0
        # denominator = x0.shape[0] * x0.shape[1], as in the PyTorch module.
        self.inv_denom = 1.0 / float(x0.shape[0] * x0.shape[1])

    def __call__(self, x):
        return _upper_level_impl(x, self.x0, self.inv_denom)


if __name__ == "__main__":
    key = jax.random.PRNGKey(0)
    k0, k1 = jax.random.split(key)

    # Small NCHW shapes, consistent with a conv-style input.
    shape = (2, 4, 16, 16)
    x0 = jax.random.normal(k0, shape, dtype=jnp.float32)   # stored self.x
    x = jax.random.normal(k1, shape, dtype=jnp.float32)    # forward input

    model = UpperLevel(x0)
    out = jax.block_until_ready(model(x))

    # Pure-JAX reference check (Frobenius norm squared / (B*C)).
    ref = jnp.sum((x - x0) ** 2) / (shape[0] * shape[1])
    assert jnp.allclose(out, ref, rtol=1e-5, atol=1e-5), (out, ref)

    print("KERNEL_OK")
</pallas_src>

<mosaic_0001>
module attributes {stable_mosaic.version = 11 : i64} {
  func.func @kernel(%arg0: i32, %arg1: memref<16x128xf32, #tpu.memory_space<vmem>>, %arg2: memref<16x128xf32, #tpu.memory_space<vmem>>, %arg3: memref<1x1xf32, #tpu.memory_space<vmem>>, %arg4: memref<8x128xf32, #tpu.memory_space<vmem>>) attributes {dimension_semantics = [#tpu.dimension_semantics<arbitrary>], iteration_bounds = array<i64: 1>, scalar_prefetch = 0 : i64, scratch_operands = 1 : i64, tpu.core_type = #tpu.core_type<tc>, window_params = [{transform_indices = @transform_0, window_bounds = array<i64: 16, 128>}, {transform_indices = @transform_1, window_bounds = array<i64: 16, 128>}, {pipeline_mode = #tpu.pipeline_mode<synchronous>, transform_indices = @transform_2, window_bounds = array<i64: 1, 1>}]} {
    %c0_i32 = arith.constant 0 : i32
    %0 = arith.cmpi eq, %arg0, %c0_i32 : i32
    %1 = arith.extui %0 : i1 to i32
    %c0_i32_0 = arith.constant 0 : i32
    %2 = arith.cmpi ne, %1, %c0_i32_0 : i32
    scf.if %2 {
      %cst_10 = arith.constant 0.000000e+00 : f32
      %15 = vector.broadcast %cst_10 : f32 to vector<8x128xf32>
      %c0_11 = arith.constant 0 : index
      %c0_12 = arith.constant 0 : index
      %16 = vector.load %arg4[%c0_11, %c0_12] : memref<8x128xf32, #tpu.memory_space<vmem>>, vector<8x128xf32>
      tpu.vector_store %arg4[%c0_11, %c0_12], %15 {strides = array<i32>} : memref<8x128xf32, #tpu.memory_space<vmem>>, vector<8x128xf32>,
    } else {
    }
    %c0 = arith.constant 0 : index
    %c0_1 = arith.constant 0 : index
    %3 = vector.load %arg1[%c0, %c0_1] : memref<16x128xf32, #tpu.memory_space<vmem>>, vector<16x128xf32>
    %c0_2 = arith.constant 0 : index
    %c0_3 = arith.constant 0 : index
    %4 = vector.load %arg2[%c0_2, %c0_3] : memref<16x128xf32, #tpu.memory_space<vmem>>, vector<16x128xf32>
    %5 = arith.subf %3, %4 : vector<16x128xf32>
    %6 = arith.mulf %5, %5 : vector<16x128xf32>
    %c0_4 = arith.constant 0 : index
    %c0_5 = arith.constant 0 : index
    %7 = vector.load %arg4[%c0_4, %c0_5] : memref<8x128xf32, #tpu.memory_space<vmem>>, vector<8x128xf32>
    %8 = vector.shape_cast %6 : vector<16x128xf32> to vector<2x8x128xf32>
    %cst = arith.constant dense<0.000000e+00> : vector<8x128xf32>
    %9 = vector.multi_reduction <add>, %8, %cst [0] : vector<2x8x128xf32> to vector<8x128xf32>
    %10 = arith.addf %7, %9 : vector<8x128xf32>
    %c0_6 = arith.constant 0 : index
    %c0_7 = arith.constant 0 : index
    %11 = vector.load %arg4[%c0_6, %c0_7] : memref<8x128xf32, #tpu.memory_space<vmem>>, vector<8x128xf32>
    tpu.vector_store %arg4[%c0_6, %c0_7], %10 {strides = array<i32>} : memref<8x128xf32, #tpu.memory_space<vmem>>, vector<8x128xf32>,
    %c0_i32_8 = arith.constant 0 : i32
    %12 = arith.cmpi eq, %arg0, %c0_i32_8 : i32
    %13 = arith.extui %12 : i1 to i32
    %c0_i32_9 = arith.constant 0 : i32
    %14 = arith.cmpi ne, %13, %c0_i32_9 : i32
    scf.if %14 {
      %c0_10 = arith.constant 0 : index
      %c0_11 = arith.constant 0 : index
      %15 = vector.load %arg4[%c0_10, %c0_11] : memref<8x128xf32, #tpu.memory_space<vmem>>, vector<8x128xf32>
      %16 = vector.shape_cast %15 : vector<8x128xf32> to vector<1x8x128xf32>
      %cst_12 = arith.constant dense<0.000000e+00> : vector<1xf32>
      %17 = vector.multi_reduction <add>, %16, %cst_12 [1, 2] : vector<1x8x128xf32> to vector<1xf32>
      %18 = vector.shape_cast %17 : vector<1xf32> to vector<1x1x1xf32>
      %19 = vector.extract %18[0, 0, 0] : f32 from vector<1x1x1xf32>
      %20 = vector.broadcast %19 : f32 to vector<1x1xf32>
      %c0_13 = arith.constant 0 : index
      %c0_14 = arith.constant 0 : index
      %21 = vector.load %arg3[%c0_13, %c0_14] : memref<1x1xf32, #tpu.memory_space<vmem>>, vector<1x1xf32>
      tpu.vector_store %arg3[%c0_13, %c0_14], %20 {strides = array<i32>} : memref<1x1xf32, #tpu.memory_space<vmem>>, vector<1x1xf32>,
    } else {
    }
    return
  }
  func.func @transform_0(%arg0: i32) -> (i32, i32) {
    %c0_i32 = arith.constant 0 : i32
    %c0_i32_0 = arith.constant 0 : i32
    return %arg0, %c0_i32 : i32, i32
  }
  func.func @transform_1(%arg0: i32) -> (i32, i32) {
    %c0_i32 = arith.constant 0 : i32
    %c0_i32_0 = arith.constant 0 : i32
    return %arg0, %c0_i32 : i32, i32
  }
  func.func @transform_2(%arg0: i32) -> (i32, i32) {
    %c0_i32 = arith.constant 0 : i32
    %c0_i32_0 = arith.constant 0 : i32
    %c0_i32_1 = arith.constant 0 : i32
    return %c0_i32, %c0_i32_0 : i32, i32
  }
}

</mosaic_0001>

<llo_original>
// kernel: _upper_level_impl.1
$region0: #{_upper_level_impl.1}
  #allocation0 [shape = 'u32[]', space=smem, size = 0x4, offset = 0x4, fixed_abs, tag = 'smem constant byte address 0x4 - core index']
  #allocation1 [shape = 'u32[144,128]{1,0:T(1,128)}', space=vmem, size = 0x12000, scoped, tag = 'internal scratch']
  #allocation2 [shape = 'f32[8,128]{1,0:T(8,128)}', space=vmem, size = 0x1000, scoped, tag = 'scratch operand']
  %s0 = inlined_call_operand.vmem [shape: f32[16,128], index: 0, kind: input, shape index: {}]
  %s1 = inlined_call_operand.vmem [shape: f32[16,128], index: 1, kind: input, shape index: {}]
  %s2 = inlined_call_operand.hbm [shape: f32[1,1], index: 2, kind: output, shape index: {}]
  %s3 = sld [smem:[#allocation0]]
  $region26: #{_upper_level_impl.1} parent=0
    _
  %s5 = ssub.s32 1, %s3
  %s6 = scalar_select 0, %s5, %s3
  $region1: #{_upper_level_impl.1} parent=0
    #allocation3 [shape = 'u8[512]{0}', space=vmem, size = 0x400, scoped, tag = 'output window, operand 0, single buffered']
    #allocation4 [shape = 's32[1]{0}', space=sflag, size = 0x4, scoped, tag = 'scoped memory for _upper_level_impl.1']
    %7 = vsyncpa [#allocation4], 0
    // Predicated region
    $region2: #{_upper_level_impl.1} parent=1 // pred_check
      _
    $region3: #{_upper_level_impl.1} parent=1 // pred_check_branch
      %9 = sbr.rel (0) target = $region5
    $region4: #{_upper_level_impl.1} parent=1 // pred_region
      _
    $region5: #{_upper_level_impl.1} parent=1 // pred_fallthru
      _
    // Predicated region
    $region6: #{_upper_level_impl.1} parent=1 // pred_check
      _
    $region7: #{_upper_level_impl.1} parent=1 // pred_check_branch
      %11 = sbr.rel (0) target = $region9
    $region8: #{_upper_level_impl.1} parent=1 // pred_region
      _
    $region9: #{_upper_level_impl.1} parent=1 // pred_fallthru
      _
    %p12 = scmp.eq.s32.totalorder 0, 0
    // Predicated region
    $region10: #{_upper_level_impl.1} parent=1 // pred_check
      %p13 = pneg %p12
    $region11: #{_upper_level_impl.1} parent=1 // pred_check_branch
      %15 = sbr.rel (%p13) target = $region13
    $region12: #{_upper_level_impl.1} parent=1 // pred_region
      %16 = vst [vmem:[#allocation2] sm:$0xff] 0.0
    $region13: #{_upper_level_impl.1} parent=1 // pred_fallthru
      _
    %v17 = vld [vmem:[%s0] sm:$0xff]
    %v18 = vld [vmem:[%s0 + $0x8] sm:$0xff]
    %v19 = vld [vmem:[%s1] sm:$0xff]
    %v20 = vld [vmem:[%s1 + $0x8] sm:$0xff]
    %v21 = vsub.f32 %v17, %v19
    %v22 = vsub.f32 %v18, %v20
    %v23 = vmul.f32 %v21, %v21
    %v24 = vmul.f32 %v22, %v22
    %v25 = vld [vmem:[#allocation2] sm:$0xff]
    %v26 = vadd.f32 %v23, %v24
    %v27 = vadd.f32 %v25, %v26
    %28 = vst [vmem:[#allocation2] sm:$0xff] %v27
    // Predicated region
    $region14: #{_upper_level_impl.1} parent=1 // pred_check
      %p29 = pneg %p12
    $region15: #{_upper_level_impl.1} parent=1 // pred_check_branch
      %31 = sbr.rel (%p29) target = $region17
    $region16: #{_upper_level_impl.1} parent=1 // pred_region
      %v32 = vld [vmem:[#allocation2] sm:$0xff]
      %33 = vadd.xlane.f32.xlu0 %v32
      %v34 = vpop.xlane.xlu0 %33
      %v35 = vrot.slane %v34, 4
      %v36 = vadd.f32 %v34, %v35
      %v37 = vrot.slane %v36, 2
      %v38 = vadd.f32 %v36, %v37
      %v39 = vrot.slane %v38, 1
      %v40 = vadd.f32 %v38, %v39
      %s41 = vtos %v40
      %v42 = vstv %s41
      %vm43 = vcmask 0
      %44 = vst.msk [vmem:[#allocation3] sm:$0x1] %vm43, %v42
    $region17: #{_upper_level_impl.1} parent=1 // pred_fallthru
      _
    // Predicated region
    $region18: #{_upper_level_impl.1} parent=1 // pred_check
      _
    $region19: #{_upper_level_impl.1} parent=1 // pred_check_branch
      %46 = sbr.rel (0) target = $region21
    $region20: #{_upper_level_impl.1} parent=1 // pred_region
      %s48 = ssub.s32 16, 16
      %49 = vsyncadd [#allocation4], %s48
      %s51 = sshll.u32 [#allocation3], 4
      %s52 = int_to_ptr.vmem [resolvable:$true] %s51
      %54 = dma.vmem_to_hbm [thread:$0]  %s52, 16, %s2, [#allocation4]
    $region21: #{_upper_level_impl.1} parent=1 // pred_fallthru
      _
    // Predicated region
    $region22: #{_upper_level_impl.1} parent=1 // pred_check
      _
    $region23: #{_upper_level_impl.1} parent=1 // pred_check_branch
      %56 = sbr.rel (0) target = $region25
    $region24: #{_upper_level_impl.1} parent=1 // pred_region
      %57 = dma.done [#allocation4], 16
    $region25: #{_upper_level_impl.1} parent=1 // pred_fallthru
      _
    %58 = vsyncpa [#allocation4], 1

</llo_original>
